<compile_context>
chip_gen: v7x
topology: tpu7x:2x2x1
jax: 0.10.0
libtpu: 0.0.40
codegen_flags: <defaults>
</compile_context>

<pallas_src>
import math

import jax
import jax.numpy as jnp
from jax.experimental import pallas as pl
from jax.experimental.pallas import tpu as pltpu


def _round_up(v: int, m: int) -> int:
    return (v + m - 1) // m * m


# ------------------------------ Pallas kernel ------------------------------

def _patch_proj_kernel(p_ref, w_ref, b_ref, o_ref, acc_ref):
    """One (tm, tn) output tile of  patches @ W + bias, accumulated over K."""

    @pl.when(pl.program_id(2) == 0)
    def _init():
        acc_ref[...] = jnp.zeros_like(acc_ref)

    acc_ref[...] += jnp.dot(p_ref[...], w_ref[...],
                            preferred_element_type=jnp.float32)

    @pl.when(pl.program_id(2) == pl.num_programs(2) - 1)
    def _finalize():
        o_ref[...] = (acc_ref[...] + b_ref[...]).astype(o_ref.dtype)


def _patch_proj(patches, w2d, bias2d, *, tm, tn, tk):
    mp, kp = patches.shape
    _, ep = w2d.shape
    grid = (mp // tm, ep // tn, kp // tk)
    return pl.pallas_call(
        _patch_proj_kernel,
        out_shape=jax.ShapeDtypeStruct((mp, ep), jnp.float32),
        grid_spec=pltpu.PrefetchScalarGridSpec(
            num_scalar_prefetch=0,
            grid=grid,
            in_specs=[
                pl.BlockSpec((tm, tk), lambda i, j, k: (i, k)),   # patch rows
                pl.BlockSpec((tk, tn), lambda i, j, k: (k, j)),   # weight
                pl.BlockSpec((1, tn), lambda i, j, k: (0, j)),    # bias
            ],
            out_specs=pl.BlockSpec((tm, tn), lambda i, j, k: (i, j)),
            scratch_shapes=[pltpu.VMEM((tm, tn), jnp.float32)],
        ),
        compiler_params=pltpu.CompilerParams(
            dimension_semantics=("parallel", "parallel", "arbitrary"),
            vmem_limit_bytes=32 * 1024 * 1024,
        ),
    )(patches, w2d, bias2d)


# ------------------------------ module forward ------------------------------

def patch_embed_forward(x, weight, bias, *, kernel_size=(16, 16),
                        stride=(16, 16), padding=(0, 0)):
    """Equivalent of PatchEmbed.forward: Conv2d projection, then permute(0,2,3,1)."""
    kh, kw = kernel_size
    sh, sw = stride
    ph, pw = padding
    if (kh, kw) != (sh, sw):
        # TODO(synk): overlapping projection (kernel != stride) would need an
        # im2col/halo path; SAM's PatchEmbed always uses kernel == stride.
        raise NotImplementedError("patch_embed_forward requires kernel_size == stride")

    n, c, h, w = x.shape
    e = weight.shape[0]
    x = x.astype(jnp.float32)
    if ph or pw:
        x = jnp.pad(x, ((0, 0), (0, 0), (ph, ph), (pw, pw)))
        h, w = h + 2 * ph, w + 2 * pw

    hp = (h - kh) // sh + 1
    wp = (w - kw) // sw + 1
    x = x[:, :, :hp * kh, :wp * kw]          # Conv2d truncates trailing rows/cols

    # Non-overlapping patchify: (N,C,Hp,kh,Wp,kw) -> (N,Hp,Wp,C,kh,kw) -> (M,K).
    m = n * hp * wp
    k = c * kh * kw
    patches = x.reshape(n, c, hp, kh, wp, kw)
    patches = jnp.transpose(patches, (0, 2, 4, 1, 3, 5)).reshape(m, k)

    w2d = weight.reshape(e, k).T.astype(jnp.float32)   # (K, E), (c, kh, kw) order
    b = bias.astype(jnp.float32)

    # MXU-friendly tile sizes: 256-wide where the dims allow; lane dims kept as
    # multiples of 128, sublane dims multiples of 8. Zero padding is harmless:
    # padded K contributes nothing to the dot, padded M/E are sliced off.
    tm = 256 if m >= 256 else _round_up(m, 8)
    tk = 256 if k >= 256 else _round_up(k, 128)
    tn = 256 if e >= 256 else _round_up(e, 128)
    mp, kp, ep = _round_up(m, tm), _round_up(k, tk), _round_up(e, tn)

    patches = jnp.pad(patches, ((0, mp - m), (0, kp - k)))
    w2d = jnp.pad(w2d, ((0, kp - k), (0, ep - e)))
    b2d = jnp.pad(b, (0, ep - e)).reshape(1, ep)

    out = _patch_proj(patches, w2d, b2d, tm=tm, tn=tn, tk=tk)
    # (M, E) -> (N, Hp, Wp, E): already the permute(0, 2, 3, 1) layout.
    return out[:m, :e].reshape(n, hp, wp, e)


# ---------------------------------- main ----------------------------------

if __name__ == "__main__":
    key = jax.random.PRNGKey(0)
    kx, kw_, kb = jax.random.split(key, 3)

    N, C, H, W = 2, 3, 64, 64          # small, consistent with the module defaults
    E, P = 768, 16                     # embed_dim, patch size (kernel = stride = 16)

    x = jax.random.normal(kx, (N, C, H, W), jnp.float32)
    weight = jax.random.normal(kw_, (E, C, P, P), jnp.float32) / math.sqrt(C * P * P)
    bias = 0.02 * jax.random.normal(kb, (E,), jnp.float32)

    fwd = jax.jit(patch_embed_forward)
    out = fwd(x, weight, bias)
    jax.block_until_ready(out)
    assert out.shape == (N, H // P, W // P, E), out.shape
    assert bool(jnp.all(jnp.isfinite(out)))

    # Correctness check against the XLA conv reference (same semantics as the
    # PyTorch module: Conv2d + permute(0, 2, 3, 1)).
    ref = jax.lax.conv_general_dilated(
        x, weight, window_strides=(P, P), padding="VALID",
        dimension_numbers=("NCHW", "OIHW", "NCHW"))
    ref = jnp.transpose(ref + bias[None, :, None, None], (0, 2, 3, 1))
    err = float(jnp.max(jnp.abs(out - ref)))
    assert jnp.allclose(out, ref, atol=1e-3, rtol=1e-3), err

    print("KERNEL_OK")
</pallas_src>

<mosaic_0001>
module attributes {stable_mosaic.version = 11 : i64} {
  func.func @_patch_proj_kernel(%arg0: i32, %arg1: i32, %arg2: i32, %arg3: memref<32x256xf32, #tpu.memory_space<vmem>>, %arg4: memref<256x256xf32, #tpu.memory_space<vmem>>, %arg5: memref<1x256xf32, #tpu.memory_space<vmem>>, %arg6: memref<32x256xf32, #tpu.memory_space<vmem>>, %arg7: memref<32x256xf32, #tpu.memory_space<vmem>>) attributes {dimension_semantics = [#tpu.dimension_semantics<parallel>, #tpu.dimension_semantics<parallel>, #tpu.dimension_semantics<arbitrary>], iteration_bounds = array<i64: 1, 3, 3>, scalar_prefetch = 0 : i64, scratch_operands = 1 : i64, tpu.core_type = #tpu.core_type<tc>, window_params = [{transform_indices = @transform_0, window_bounds = array<i64: 32, 256>}, {transform_indices = @transform_1, window_bounds = array<i64: 256, 256>}, {transform_indices = @transform_2, window_bounds = array<i64: 1, 256>}, {transform_indices = @transform_3, window_bounds = array<i64: 32, 256>}]} {
    %c0_i32 = arith.constant 0 : i32
    %0 = arith.cmpi eq, %arg2, %c0_i32 : i32
    %1 = arith.extui %0 : i1 to i32
    %c0_i32_0 = arith.constant 0 : i32
    %2 = arith.cmpi ne, %1, %c0_i32_0 : i32
    scf.if %2 {
      %cst_9 = arith.constant 0.000000e+00 : f32
      %12 = vector.broadcast %cst_9 : f32 to vector<32x256xf32>
      %c0_10 = arith.constant 0 : index
      %c0_11 = arith.constant 0 : index
      %13 = vector.load %arg7[%c0_10, %c0_11] : memref<32x256xf32, #tpu.memory_space<vmem>>, vector<32x256xf32>
      tpu.vector_store %arg7[%c0_10, %c0_11], %12 {strides = array<i32>} : memref<32x256xf32, #tpu.memory_space<vmem>>, vector<32x256xf32>,
    } else {
    }
    %c0 = arith.constant 0 : index
    %c0_1 = arith.constant 0 : index
    %3 = vector.load %arg7[%c0, %c0_1] : memref<32x256xf32, #tpu.memory_space<vmem>>, vector<32x256xf32>
    %c0_2 = arith.constant 0 : index
    %c0_3 = arith.constant 0 : index
    %4 = vector.load %arg3[%c0_2, %c0_3] : memref<32x256xf32, #tpu.memory_space<vmem>>, vector<32x256xf32>
    %c0_4 = arith.constant 0 : index
    %c0_5 = arith.constant 0 : index
    %5 = vector.load %arg4[%c0_4, %c0_5] : memref<256x256xf32, #tpu.memory_space<vmem>>, vector<256x256xf32>
    %cst = arith.constant dense<0.000000e+00> : vector<32x256xf32>
    %6 = tpu.matmul %4, %5, %cst {dimension_numbers = #tpu.dot_dimension_numbers<[1], [0], [0], [1], [0, 0, 1, 1], [], []>} : vector<32x256xf32>, vector<256x256xf32>, vector<32x256xf32> -> vector<32x256xf32>
    %7 = arith.addf %3, %6 : vector<32x256xf32>
    %c0_6 = arith.constant 0 : index
    %c0_7 = arith.constant 0 : index
    %8 = vector.load %arg7[%c0_6, %c0_7] : memref<32x256xf32, #tpu.memory_space<vmem>>, vector<32x256xf32>
    tpu.vector_store %arg7[%c0_6, %c0_7], %7 {strides = array<i32>} : memref<32x256xf32, #tpu.memory_space<vmem>>, vector<32x256xf32>,
    %c2_i32 = arith.constant 2 : i32
    %9 = arith.cmpi eq, %arg2, %c2_i32 : i32
    %10 = arith.extui %9 : i1 to i32
    %c0_i32_8 = arith.constant 0 : i32
    %11 = arith.cmpi ne, %10, %c0_i32_8 : i32
    scf.if %11 {
      %c0_9 = arith.constant 0 : index
      %c0_10 = arith.constant 0 : index
      %12 = vector.load %arg7[%c0_9, %c0_10] : memref<32x256xf32, #tpu.memory_space<vmem>>, vector<32x256xf32>
      %c0_11 = arith.constant 0 : index
      %c0_12 = arith.constant 0 : index
      %13 = vector.load %arg5[%c0_11, %c0_12] : memref<1x256xf32, #tpu.memory_space<vmem>>, vector<1x256xf32>
      %14 = vector.broadcast %13 : vector<1x256xf32> to vector<32x256xf32>
      %15 = arith.addf %12, %14 : vector<32x256xf32>
      %c0_13 = arith.constant 0 : index
      %c0_14 = arith.constant 0 : index
      %16 = vector.load %arg6[%c0_13, %c0_14] : memref<32x256xf32, #tpu.memory_space<vmem>>, vector<32x256xf32>
      tpu.vector_store %arg6[%c0_13, %c0_14], %15 {strides = array<i32>} : memref<32x256xf32, #tpu.memory_space<vmem>>, vector<32x256xf32>,
    } else {
    }
    return
  }
  func.func @transform_0(%arg0: i32, %arg1: i32, %arg2: i32) -> (i32, i32) {
    %c0_i32 = arith.constant 0 : i32
    return %arg0, %arg2 : i32, i32
  }
  func.func @transform_1(%arg0: i32, %arg1: i32, %arg2: i32) -> (i32, i32) {
    %c0_i32 = arith.constant 0 : i32
    return %arg2, %arg1 : i32, i32
  }
  func.func @transform_2(%arg0: i32, %arg1: i32, %arg2: i32) -> (i32, i32) {
    %c0_i32 = arith.constant 0 : i32
    %c0_i32_0 = arith.constant 0 : i32
    return %c0_i32, %arg1 : i32, i32
  }
  func.func @transform_3(%arg0: i32, %arg1: i32, %arg2: i32) -> (i32, i32) {
    %c0_i32 = arith.constant 0 : i32
    return %arg0, %arg1 : i32, i32
  }
}

</mosaic_0001>

<llo_original>
// kernel: patch_embed_forward.1
$region0: #{patch_embed_forward.1}
  #allocation0 [shape = 'u32[]', space=smem, size = 0x4, offset = 0x4, fixed_abs, tag = 'smem constant byte address 0x4 - core index']
  #allocation1 [shape = 'u32[144,128]{1,0:T(1,128)}', space=vmem, size = 0x12000, scoped, tag = 'internal scratch']
  #allocation2 [shape = 'f32[32,256]{1,0:T(8,128)}', space=vmem, size = 0x8000, scoped, tag = 'scratch operand']
  %s0 = inlined_call_operand.vmem [shape: f32[32,768], index: 0, kind: input, shape index: {}]
  %s1 = inlined_call_operand.vmem [shape: f32[768,768], index: 1, kind: input, shape index: {}]
  %s2 = inlined_call_operand.vmem [shape: f32[1,768], index: 2, kind: input, shape index: {}]
  %s3 = inlined_call_operand.vmem [shape: f32[32,768], index: 3, kind: output, shape index: {}]
  %s4 = sld [smem:[#allocation0]]
  $region118: #{patch_embed_forward.1} parent=0
    _
  %s6 = ssub.s32 1, %s4
  %s7 = scalar_select 0, %s6, %s4
  $region1: #{patch_embed_forward.1} parent=0
    #allocation3 [shape = 'u8[65536]{0}', space=vmem, size = 0x10000, scoped, tag = 'input window, operand 0']
    #allocation4 [shape = 'u8[524288]{0}', space=vmem, size = 0x80000, scoped, tag = 'input window, operand 1']
    #allocation5 [shape = 'u8[65536]{0}', space=vmem, size = 0x10000, scoped, tag = 'output window, operand 0']
    loop: start=0, step=1, limit=11
    $region2: #{patch_embed_forward.1} parent=1 // loop_pre_header
      _
    $region3: #{patch_embed_forward.1} parent=1 // loop_header
      %s9 = sphi 0, %s13
      %p10 = scmp.ge.s32.totalorder %s9, 11
      %s16 = sphi 0, %s35
      %s17 = sphi 0, %s31
      %s18 = sphi 0, %s27
      %s19 = sphi 0, %s16
      %s20 = sphi 0, %s17
      %s21 = sphi 0, %s18
      %s22 = sphi 0, %s19
      %s23 = sphi 0, %s20
      %s24 = sphi 0, %s21
      %s40 = sphi 0, %s42
      %s43 = sphi 0, %s40
      %s44 = sphi 0, %s43
      %s60 = sphi 0, %s44
      %s68 = sphi 0, %s70
      %s71 = sphi 0, %s68
      %s72 = sphi 0, %s71
      %s88 = sphi 0, %s72
      %s94 = sphi 0, %s96
      %s97 = sphi 0, %s94
      %s98 = sphi 0, %s97
      %s114 = sphi 0, %s98
      %s122 = sphi 0, %s124
      %s125 = sphi 0, %s122
      %s126 = sphi 0, %s125
      %s142 = sphi 0, %s126
    $region4: #{patch_embed_forward.1} parent=1 // loop_header_branch
      %12 = sbr.rel (%p10) target = $region8
    $region5: #{patch_embed_forward.1} parent=1 // loop_body
      %s14 = ssub.s32 %s9, 1
      %s15 = ssub.s32 %s9, 2
      %s25 = sadd.s32 1, %s18
      %p26 = scmp.ge.s32.totalorder %s25, 3
      %s27 = scalar_select %p26, 0, %s25
      %s28 = sadd.s32 1, %s17
      %s29 = scalar_select %p26, %s28, %s17
      %p30 = scmp.ge.s32.totalorder %s29, 3
      %s31 = scalar_select %p30, 0, %s29
      %s32 = sadd.s32 1, %s16
      %s33 = scalar_select %p30, %s32, %s16
      %p34 = scmp.ge.s32.totalorder %s33, 1
      %s35 = scalar_select %p34, 0, %s33
      %s36 = ssub.s32 %s16, %s35
      %s37 = ssub.s32 %s18, %s27
      %s38 = sor.u32 %s36, %s37
      %p39 = scmp.eq.s32.totalorder %s38, 0
      %s41 = sadd.s32 %s40, 1
      %s42 = scalar_select %p39, %s40, %s41
      %p45 = pneg %p39
      %p46 = scmp.eq.s32.totalorder %s9, 8
      %p47 = por %p45, %p46
      %p48 = scmp.ne.s32.totalorder %s40, %s43
      %p49 = scmp.eq.s32.totalorder %s9, 0
      %p50 = por %p48, %p49
      %p51 = scmp.ne.s32.totalorder %s40, %s43
      %p52 = scmp.eq.s32.totalorder %s14, 8
      %p53 = por %p51, %p52
      %p54 = scmp.ne.s32.totalorder %s43, %s44
      %p55 = scmp.eq.s32.totalorder %s14, 0
      %p56 = por %p54, %p55
      %p57 = scmp.ne.s32.totalorder %s43, %s44
      %p58 = scmp.eq.s32.totalorder %s15, 8
      %p59 = por %p57, %p58
      %p61 = scmp.ne.s32.totalorder %s44, %s60
      %p62 = scmp.eq.s32.totalorder %s15, 0
      %p63 = por %p61, %p62
      %s64 = ssub.s32 %s18, %s27
      %s65 = ssub.s32 %s17, %s31
      %s66 = sor.u32 %s64, %s65
      %p67 = scmp.eq.s32.totalorder %s66, 0
      %s69 = sadd.s32 %s68, 1
      %s70 = scalar_select %p67, %s68, %s69
      %p73 = pneg %p67
      %p74 = scmp.eq.s32.totalorder %s9, 8
      %p75 = por %p73, %p74
      %p76 = scmp.ne.s32.totalorder %s68, %s71
      %p77 = scmp.eq.s32.totalorder %s9, 0
      %p78 = por %p76, %p77
      %p79 = scmp.ne.s32.totalorder %s68, %s71
      %p80 = scmp.eq.s32.totalorder %s14, 8
      %p81 = por %p79, %p80
      %p82 = scmp.ne.s32.totalorder %s71, %s72
      %p83 = scmp.eq.s32.totalorder %s14, 0
      %p84 = por %p82, %p83
      %p85 = scmp.ne.s32.totalorder %s71, %s72
      %p86 = scmp.eq.s32.totalorder %s15, 8
      %p87 = por %p85, %p86
      %p89 = scmp.ne.s32.totalorder %s72, %s88
      %p90 = scmp.eq.s32.totalorder %s15, 0
      %p91 = por %p89, %p90
      %s92 = ssub.s32 %s17, %s31
      %p93 = scmp.eq.s32.totalorder %s92, 0
      %s95 = sadd.s32 %s94, 1
      %s96 = scalar_select %p93, %s94, %s95
      %p99 = pneg %p93
      %p100 = scmp.eq.s32.totalorder %s9, 8
      %p101 = por %p99, %p100
      %p102 = scmp.ne.s32.totalorder %s94, %s97
      %p103 = scmp.eq.s32.totalorder %s9, 0
      %p104 = por %p102, %p103
      %p105 = scmp.ne.s32.totalorder %s94, %s97
      %p106 = scmp.eq.s32.totalorder %s14, 8
      %p107 = por %p105, %p106
      %p108 = scmp.ne.s32.totalorder %s97, %s98
      %p109 = scmp.eq.s32.totalorder %s14, 0
      %p110 = por %p108, %p109
      %p111 = scmp.ne.s32.totalorder %s97, %s98
      %p112 = scmp.eq.s32.totalorder %s15, 8
      %p113 = por %p111, %p112
      %p115 = scmp.ne.s32.totalorder %s98, %s114
      %p116 = scmp.eq.s32.totalorder %s15, 0
      %p117 = por %p115, %p116
      %s118 = ssub.s32 %s16, %s35
      %s119 = ssub.s32 %s17, %s31
      %s120 = sor.u32 %s118, %s119
      %p121 = scmp.eq.s32.totalorder %s120, 0
      %s123 = sadd.s32 %s122, 1
      %s124 = scalar_select %p121, %s122, %s123
      %p127 = pneg %p121
      %p128 = scmp.eq.s32.totalorder %s9, 8
      %p129 = por %p127, %p128
      %p130 = scmp.ne.s32.totalorder %s122, %s125
      %p131 = scmp.eq.s32.totalorder %s9, 0
      %p132 = por %p130, %p131
      %p133 = scmp.ne.s32.totalorder %s122, %s125
      %p134 = scmp.eq.s32.totalorder %s14, 8
      %p135 = por %p133, %p134
      %p136 = scmp.ne.s32.totalorder %s125, %s126
      %p137 = scmp.eq.s32.totalorder %s14, 0
      %p138 = por %p136, %p137
      %p139 = scmp.ne.s32.totalorder %s125, %s126
      %p140 = scmp.eq.s32.totalorder %s15, 8
      %p141 = por %p139, %p140
      %p143 = scmp.ne.s32.totalorder %s126, %s142
      %p144 = scmp.eq.s32.totalorder %s15, 0
      %p145 = por %p143, %p144
      %p146 = scmp.le.s32.totalorder 1, %s9
      %p147 = scmp.lt.s32.totalorder %s9, 10
      %p148 = pnand %p146, %p147
      %p149 = pneg %p148
      // Predicated region
      $region9: #{patch_embed_forward.1} parent=5 // pred_check
        _
      $region10: #{patch_embed_forward.1} parent=5 // pred_check_branch
        %151 = sbr.rel (%p148) target = $region12
      $region11: #{patch_embed_forward.1} parent=5 // pred_region
        %s152 = ssub.s32 %s9, 1
      $region12: #{patch_embed_forward.1} parent=5 // pred_fallthru
        _
      %p153 = scmp.lt.s32.totalorder %s9, 9
      // Predicated region
      $region13: #{patch_embed_forward.1} parent=5 // pred_check
        %p154 = pneg %p153
      $region14: #{patch_embed_forward.1} parent=5 // pred_check_branch
        %156 = sbr.rel (%p154) target = $region16
      $region15: #{patch_embed_forward.1} parent=5 // pred_region
        // Predicated region
        $region17: #{patch_embed_forward.1} parent=15 // pred_check
          %p157 = pneg %p50
        $region18: #{patch_embed_forward.1} parent=15 // pred_check_branch
          %159 = sbr.rel (%p157) target = $region20
        $region19: #{patch_embed_forward.1} parent=15 // pred_region
          %s160 = sand.u32 %s40, 1
          %s161 = sand.u32 %s40, 1
          %s162 = smul.addr %s161, 64
          %s163 = scalar_lea.vmem [#allocation3], %s162
          %s164 = smul.u32 4, %s16
          %s165 = smul.u32 2, %s18
          %s166 = smul.addr %s164, 6
          %s167 = sadd.s32 %s165, %s166
          %s168 = smul.addr %s167, 8
          %s169 = scalar_lea.vmem %s0, %s168
          // Predicated region
          $region21: #{patch_embed_forward.1} parent=19 // pred_check
            _
          $region22: #{patch_embed_forward.1} parent=19 // pred_check_branch
            %171 = sbr.rel (0) target = $region24
          $region23: #{patch_embed_forward.1} parent=19 // pred_region
            // Predicated region
            $region25: #{patch_embed_forward.1} parent=23 // pred_check
              _
            $region26: #{patch_embed_forward.1} parent=23 // pred_check_branch
              %173 = sbr.rel (0) target = $region28
            $region27: #{patch_embed_forward.1} parent=23 // pred_region
              loop: start=0, step=1, limit=1
              $region29: #{patch_embed_forward.1} parent=27 // loop_pre_header
                _
              $region30: #{patch_embed_forward.1} parent=27 // loop_header
                %s175 = sphi 0, %s179
                %p176 = scmp.ge.s32.totalorder %s175, 1
                %s180 = sphi %s169, %s169
                %s181 = sphi %s163, %s163
              $region31: #{patch_embed_forward.1} parent=27 // loop_header_branch
                %178 = sbr.rel (%p176) target = $region35
              $region32: #{patch_embed_forward.1} parent=27 // loop_body
                %v182 = vld [vmem:[%s180] sm:$0xff]
                %183 = vst [vmem:[%s181] sm:$0xff] %v182
                %v184 = vld [vmem:[%s180 + $0x8] sm:$0xff]
                %185 = vst [vmem:[%s181 + $0x8] sm:$0xff] %v184
                %v186 = vld [vmem:[%s180 + $0x30] sm:$0xff]
                %187 = vst [vmem:[%s181 + $0x10] sm:$0xff] %v186
                %v188 = vld [vmem:[%s180 + $0x38] sm:$0xff]
                %189 = vst [vmem:[%s181 + $0x18] sm:$0xff] %v188
                %v190 = vld [vmem:[%s180 + $0x60] sm:$0xff]
                %191 = vst [vmem:[%s181 + $0x20] sm:$0xff] %v190
                %v192 = vld [vmem:[%s180 + $0x68] sm:$0xff]
                %193 = vst [vmem:[%s181 + $0x28] sm:$0xff] %v192
                %v194 = vld [vmem:[%s180 + $0x90] sm:$0xff]
                %195 = vst [vmem:[%s181 + $0x30] sm:$0xff] %v194
                %v196 = vld [vmem:[%s180 + $0x98] sm:$0xff]
                %197 = vst [vmem:[%s181 + $0x38] sm:$0xff] %v196
              $region33: #{patch_embed_forward.1} parent=27 // loop_footer
                %s179 = sadd.s32 1, %s175
              $region34: #{patch_embed_forward.1} parent=27 // loop_footer_branch
                %174 = sbr.rel target = $region30
              $region35: #{patch_embed_forward.1} parent=27 // loop_exit
                _
            $region28: #{patch_embed_forward.1} parent=23 // pred_fallthru
              _
            // Predicated region
            $region36: #{patch_embed_forward.1} parent=23 // pred_check
              _
            $region37: #{patch_embed_forward.1} parent=23 // pred_check_branch
              %199 = sbr.rel target = $region39
            $region38: #{patch_embed_forward.1} parent=23 // pred_region
              _
            $region39: #{patch_embed_forward.1} parent=23 // pred_fallthru
              _
          $region24: #{patch_embed_forward.1} parent=19 // pred_fallthru
            _
          %200 = vnop
        $region20: #{patch_embed_forward.1} parent=15 // pred_fallthru
          _
        // Predicated region
        $region40: #{patch_embed_forward.1} parent=15 // pred_check
          %p201 = pneg %p78
        $region41: #{patch_embed_forward.1} parent=15 // pred_check_branch
          %203 = sbr.rel (%p201) target = $region43
        $region42: #{patch_embed_forward.1} parent=15 // pred_region
          %s204 = sand.u32 %s68, 1
          %s205 = sand.u32 %s68, 1
          %s206 = smul.addr %s205, 512
          %s207 = scalar_lea.vmem [#allocation4], %s206
          %s208 = smul.u32 32, %s18
          %s209 = smul.u32 2, %s17
          %s210 = smul.addr %s208, 6
          %s211 = sadd.s32 %s209, %s210
          %s212 = smul.addr %s211, 8
          %s213 = scalar_lea.vmem %s1, %s212
          // Predicated region
          $region44: #{patch_embed_forward.1} parent=42 // pred_check
            _
          $region45: #{patch_embed_forward.1} parent=42 // pred_check_branch
            %215 = sbr.rel (0) target = $region47
          $region46: #{patch_embed_forward.1} parent=42 // pred_region
            // Predicated region
            $region48: #{patch_embed_forward.1} parent=46 // pred_check
              _
            $region49: #{patch_embed_forward.1} parent=46 // pred_check_branch
              %217 = sbr.rel (0) target = $region51
            $region50: #{patch_embed_forward.1} parent=46 // pred_region
              loop: start=0, step=1, limit=1
              $region52: #{patch_embed_forward.1} parent=50 // loop_pre_header
                _
              $region53: #{patch_embed_forward.1} parent=50 // loop_header
                %s219 = sphi 0, %s223
                %p220 = scmp.ge.s32.totalorder %s219, 1
                %s224 = sphi %s213, %s213
                %s225 = sphi %s207, %s207
              $region54: #{patch_embed_forward.1} parent=50 // loop_header_branch
                %222 = sbr.rel (%p220) target = $region58
              $region55: #{patch_embed_forward.1} parent=50 // loop_body
                %v226 = vld [vmem:[%s224] sm:$0xff]
                %227 = vst [vmem:[%s225] sm:$0xff] %v226
                %v228 = vld [vmem:[%s224 + $0x8] sm:$0xff]
                %229 = vst [vmem:[%s225 + $0x8] sm:$0xff] %v228
                %v230 = vld [vmem:[%s224 + $0x30] sm:$0xff]
                %231 = vst [vmem:[%s225 + $0x10] sm:$0xff] %v230
                %v232 = vld [vmem:[%s224 + $0x38] sm:$0xff]
                %233 = vst [vmem:[%s225 + $0x18] sm:$0xff] %v232
                %v234 = vld [vmem:[%s224 + $0x60] sm:$0xff]
                %235 = vst [vmem:[%s225 + $0x20] sm:$0xff] %v234
                %v236 = vld [vmem:[%s224 + $0x68] sm:$0xff]
                %237 = vst [vmem:[%s225 + $0x28] sm:$0xff] %v236
                %v238 = vld [vmem:[%s224 + $0x90] sm:$0xff]
                %239 = vst [vmem:[%s225 + $0x30] sm:$0xff] %v238
                %v240 = vld [vmem:[%s224 + $0x98] sm:$0xff]
                %241 = vst [vmem:[%s225 + $0x38] sm:$0xff] %v240
                %v242 = vld [vmem:[%s224 + $0xc0] sm:$0xff]
                %243 = vst [vmem:[%s225 + $0x40] sm:$0xff] %v242
                %v244 = vld [vmem:[%s224 + $0xc8] sm:$0xff]
                %245 = vst [vmem:[%s225 + $0x48] sm:$0xff] %v244
                %v246 = vld [vmem:[%s224 + $0xf0] sm:$0xff]
                %247 = vst [vmem:[%s225 + $0x50] sm:$0xff] %v246
                %v248 = vld [vmem:[%s224 + $0xf8] sm:$0xff]
                %249 = vst [vmem:[%s225 + $0x58] sm:$0xff] %v248
                %v250 = vld [vmem:[%s224 + $0x120] sm:$0xff]
                %251 = vst [vmem:[%s225 + $0x60] sm:$0xff] %v250
                %v252 = vld [vmem:[%s224 + $0x128] sm:$0xff]
                %253 = vst [vmem:[%s225 + $0x68] sm:$0xff] %v252
                %v254 = vld [vmem:[%s224 + $0x150] sm:$0xff]
                %255 = vst [vmem:[%s225 + $0x70] sm:$0xff] %v254
                %v256 = vld [vmem:[%s224 + $0x158] sm:$0xff]
                %257 = vst [vmem:[%s225 + $0x78] sm:$0xff] %v256
                %v258 = vld [vmem:[%s224 + $0x180] sm:$0xff]
                %259 = vst [vmem:[%s225 + $0x80] sm:$0xff] %v258
                %v260 = vld [vmem:[%s224 + $0x188] sm:$0xff]
                %261 = vst [vmem:[%s225 + $0x88] sm:$0xff] %v260
                %v262 = vld [vmem:[%s224 + $0x1b0] sm:$0xff]
                %263 = vst [vmem:[%s225 + $0x90] sm:$0xff] %v262
                %v264 = vld [vmem:[%s224 + $0x1b8] sm:$0xff]
                %265 = vst [vmem:[%s225 + $0x98] sm:$0xff] %v264
                %v266 = vld [vmem:[%s224 + $0x1e0] sm:$0xff]
                %267 = vst [vmem:[%s225 + $0xa0] sm:$0xff] %v266
                %v268 = vld [vmem:[%s224 + $0x1e8] sm:$0xff]
                %269 = vst [vmem:[%s225 + $0xa8] sm:$0xff] %v268
                %v270 = vld [vmem:[%s224 + $0x210] sm:$0xff]
                %271 = vst [vmem:[%s225 + $0xb0] sm:$0xff] %v270
                %v272 = vld [vmem:[%s224 + $0x218] sm:$0xff]
                %273 = vst [vmem:[%s225 + $0xb8] sm:$0xff] %v272
                %v274 = vld [vmem:[%s224 + $0x240] sm:$0xff]
                %275 = vst [vmem:[%s225 + $0xc0] sm:$0xff] %v274
                %v276 = vld [vmem:[%s224 + $0x248] sm:$0xff]
                %277 = vst [vmem:[%s225 + $0xc8] sm:$0xff] %v276
                %v278 = vld [vmem:[%s224 + $0x270] sm:$0xff]
                %279 = vst [vmem:[%s225 + $0xd0] sm:$0xff] %v278
                %v280 = vld [vmem:[%s224 + $0x278] sm:$0xff]
                %281 = vst [vmem:[%s225 + $0xd8] sm:$0xff] %v280
                %v282 = vld [vmem:[%s224 + $0x2a0] sm:$0xff]
                %283 = vst [vmem:[%s225 + $0xe0] sm:$0xff] %v282
                %v284 = vld [vmem:[%s224 + $0x2a8] sm:$0xff]
                %285 = vst [vmem:[%s225 + $0xe8] sm:$0xff] %v284
                %v286 = vld [vmem:[%s224 + $0x2d0] sm:$0xff]
                %287 = vst [vmem:[%s225 + $0xf0] sm:$0xff] %v286
                %v288 = vld [vmem:[%s224 + $0x2d8] sm:$0xff]
                %289 = vst [vmem:[%s225 + $0xf8] sm:$0xff] %v288
                %v290 = vld [vmem:[%s224 + $0x300] sm:$0xff]
                %291 = vst [vmem:[%s225 + $0x100] sm:$0xff] %v290
                %v292 = vld [vmem:[%s224 + $0x308] sm:$0xff]
                %293 = vst [vmem:[%s225 + $0x108] sm:$0xff] %v292
                %v294 = vld [vmem:[%s224 + $0x330] sm:$0xff]
                %295 = vst [vmem:[%s225 + $0x110] sm:$0xff] %v294
                %v296 = vld [vmem:[%s224 + $0x338] sm:$0xff]
                %297 = vst [vmem:[%s225 + $0x118] sm:$0xff] %v296
                %v298 = vld [vmem:[%s224 + $0x360] sm:$0xff]
                %299 = vst [vmem:[%s225 + $0x120] sm:$0xff] %v298
                %v300 = vld [vmem:[%s224 + $0x368] sm:$0xff]
                %301 = vst [vmem:[%s225 + $0x128] sm:$0xff] %v300
                %v302 = vld [vmem:[%s224 + $0x390] sm:$0xff]
                %303 = vst [vmem:[%s225 + $0x130] sm:$0xff] %v302
                %v304 = vld [vmem:[%s224 + $0x398] sm:$0xff]
                %305 = vst [vmem:[%s225 + $0x138] sm:$0xff] %v304
                %v306 = vld [vmem:[%s224 + $0x3c0] sm:$0xff]
                %307 = vst [vmem:[%s225 + $0x140] sm:$0xff] %v306
                %v308 = vld [vmem:[%s224 + $0x3c8] sm:$0xff]
                %309 = vst [vmem:[%s225 + $0x148] sm:$0xff] %v308
                %v310 = vld [vmem:[%s224 + $0x3f0] sm:$0xff]
                %311 = vst [vmem:[%s225 + $0x150] sm:$0xff] %v310
                %v312 = vld [vmem:[%s224 + $0x3f8] sm:$0xff]
                %313 = vst [vmem:[%s225 + $0x158] sm:$0xff] %v312
                %v314 = vld [vmem:[%s224 + $0x420] sm:$0xff]
                %315 = vst [vmem:[%s225 + $0x160] sm:$0xff] %v314
                %v316 = vld [vmem:[%s224 + $0x428] sm:$0xff]
                %317 = vst [vmem:[%s225 + $0x168] sm:$0xff] %v316
                %v318 = vld [vmem:[%s224 + $0x450] sm:$0xff]
                %319 = vst [vmem:[%s225 + $0x170] sm:$0xff] %v318
                %v320 = vld [vmem:[%s224 + $0x458] sm:$0xff]
                %321 = vst [vmem:[%s225 + $0x178] sm:$0xff] %v320
                %v322 = vld [vmem:[%s224 + $0x480] sm:$0xff]
                %323 = vst [vmem:[%s225 + $0x180] sm:$0xff] %v322
                %v324 = vld [vmem:[%s224 + $0x488] sm:$0xff]
                %325 = vst [vmem:[%s225 + $0x188] sm:$0xff] %v324
                %v326 = vld [vmem:[%s224 + $0x4b0] sm:$0xff]
                %327 = vst [vmem:[%s225 + $0x190] sm:$0xff] %v326
                %v328 = vld [vmem:[%s224 + $0x4b8] sm:$0xff]
                %329 = vst [vmem:[%s225 + $0x198] sm:$0xff] %v328
                %v330 = vld [vmem:[%s224 + $0x4e0] sm:$0xff]
                %331 = vst [vmem:[%s225 + $0x1a0] sm:$0xff] %v330
                %v332 = vld [vmem:[%s224 + $0x4e8] sm:$0xff]
                %333 = vst [vmem:[%s225 + $0x1a8] sm:$0xff] %v332
                %v334 = vld [vmem:[%s224 + $0x510] sm:$0xff]
                %335 = vst [vmem:[%s225 + $0x1b0] sm:$0xff] %v334
                %v336 = vld [vmem:[%s224 + $0x518] sm:$0xff]
                %337 = vst [vmem:[%s225 + $0x1b8] sm:$0xff] %v336
                %v338 = vld [vmem:[%s224 + $0x540] sm:$0xff]
                %339 = vst [vmem:[%s225 + $0x1c0] sm:$0xff] %v338
                %v340 = vld [vmem:[%s224 + $0x548] sm:$0xff]
                %341 = vst [vmem:[%s225 + $0x1c8] sm:$0xff] %v340
                %v342 = vld [vmem:[%s224 + $0x570] sm:$0xff]
                %343 = vst [vmem:[%s225 + $0x1d0] sm:$0xff] %v342
                %v344 = vld [vmem:[%s224 + $0x578] sm:$0xff]
                %345 = vst [vmem:[%s225 + $0x1d8] sm:$0xff] %v344
                %v346 = vld [vmem:[%s224 + $0x5a0] sm:$0xff]
                %347 = vst [vmem:[%s225 + $0x1e0] sm:$0xff] %v346
                %v348 = vld [vmem:[%s224 + $0x5a8] sm:$0xff]
                %349 = vst [vmem:[%s225 + $0x1e8] sm:$0xff] %v348
                %v350 = vld [vmem:[%s224 + $0x5d0] sm:$0xff]
                %351 = vst [vmem:[%s225 + $0x1f0] sm:$0xff] %v350
                %v352 = vld [vmem:[%s224 + $0x5d8] sm:$0xff]
                %353 = vst [vmem:[%s225 + $0x1f8] sm:$0xff] %v352
              $region56: #{patch_embed_forward.1} parent=50 // loop_footer
                %s223 = sadd.s32 1, %s219
              $region57: #{patch_embed_forward.1} parent=50 // loop_footer_branch
                %218 = sbr.rel target = $region53
              $region58: #{patch_embed_forward.1} parent=50 // loop_exit
                _
            $region51: #{patch_embed_forward.1} parent=46 // pred_fallthru
              _
            // Predicated region
            $region59: #{patch_embed_forward.1} parent=46 // pred_check
              _
            $region60: #{patch_embed_forward.1} parent=46 // pred_check_branch
              %355 = sbr.rel target = $region62
            $region61: #{patch_embed_forward.1} parent=46 // pred_region
              _
            $region62: #{patch_embed_forward.1} parent=46 // pred_fallthru
              _
          $region47: #{patch_embed_forward.1} parent=42 // pred_fallthru
            _
          %356 = vnop
        $region43: #{patch_embed_forward.1} parent=15 // pred_fallthru
          _
        // Predicated region
        $region63: #{patch_embed_forward.1} parent=15 // pred_check
          %p357 = pneg %p104
        $region64: #{patch_embed_forward.1} parent=15 // pred_check_branch
          %359 = sbr.rel (%p357) target = $region66
        $region65: #{patch_embed_forward.1} parent=15 // pred_region
          %s360 = smul.u32 2, %s17
          %p361 = scmp.lt.s32.totalorder %s360, 5
          %s362 = scalar_select %p361, %s360, 5
          %s363 = scalar_lea.vmem %s2, %s362
          %s364 = smul.u32 2, %s17
        $region66: #{patch_embed_forward.1} parent=15 // pred_fallthru
          _
      $region16: #{patch_embed_forward.1} parent=5 // pred_fallthru
        _
      %p365 = scmp.le.s32.totalorder 1, %s9
      %p366 = scmp.lt.s32.totalorder %s9, 10
      %p367 = pnand %p365, %p366
      %p368 = pneg %p367
      // Predicated region
      $region67: #{patch_embed_forward.1} parent=5 // pred_check
        _
      $region68: #{patch_embed_forward.1} parent=5 // pred_check_branch
        %370 = sbr.rel (%p367) target = $region70
      $region69: #{patch_embed_forward.1} parent=5 // pred_region
        %s371 = ssub.s32 %s9, 1
        %s372 = sand.u32 %s43, 1
        %s373 = sand.u32 %s43, 1
        %s374 = smul.addr %s373, 64
        %s375 = scalar_lea.vmem [#allocation3], %s374
        // Predicated region
        $region71: #{patch_embed_forward.1} parent=69 // pred_check
          %p376 = pneg %p56
        $region72: #{patch_embed_forward.1} parent=69 // pred_check_branch
          %378 = sbr.rel (%p376) target = $region74
        $region73: #{patch_embed_forward.1} parent=69 // pred_region
          _
        $region74: #{patch_embed_forward.1} parent=69 // pred_fallthru
          _
        %s379 = sand.u32 %s71, 1
        %s380 = sand.u32 %s71, 1
        %s381 = smul.addr %s380, 512
        %s382 = scalar_lea.vmem [#allocation4], %s381
        // Predicated region
        $region75: #{patch_embed_forward.1} parent=69 // pred_check
          %p383 = pneg %p84
        $region76: #{patch_embed_forward.1} parent=69 // pred_check_branch
          %385 = sbr.rel (%p383) target = $region78
        $region77: #{patch_embed_forward.1} parent=69 // pred_region
          _
        $region78: #{patch_embed_forward.1} parent=69 // pred_fallthru
          _
        %s386 = sand.u32 %s43, 1
        %s387 = sand.u32 %s43, 1
        %s388 = smul.addr %s387, 64
        %s389 = scalar_lea.vmem [#allocation3], %s388
        %p390 = pneg %p56
        %p391 = pneg %p53
        %s392 = sand.u32 %s71, 1
        %s393 = sand.u32 %s71, 1
        %s394 = smul.addr %s393, 512
        %s395 = scalar_lea.vmem [#allocation4], %s394
        %p396 = pneg %p84
        %p397 = pneg %p81
        %s398 = smul.u32 2, %s20
        %p399 = scmp.lt.s32.totalorder %s398, 5
        %s400 = scalar_select %p399, %s398, 5
        %s401 = scalar_lea.vmem %s2, %s400
        %p402 = pneg %p110
        %p403 = pneg %p107
        %p404 = pneg %p138
        %p405 = pneg %p135
        %s406 = sand.u32 %s125, 1
        %s407 = sand.u32 %s125, 1
        %s408 = smul.addr %s407, 64
        %s409 = scalar_lea.vmem [#allocation5], %s408
        %s410 = smul.u32 4, %s19
        %s411 = smul.u32 2, %s21
        %s412 = smul.u32 32, %s21
        %s413 = smul.u32 2, %s20
        %s414 = smul.u32 2, %s20
        %p415 = scmp.lt.s32.totalorder %s414, 5
        %s416 = scalar_select %p415, %s414, 5
        %s417 = scalar_lea.vmem %s2, %s416
        %s418 = smul.u32 2, %s20
        %s419 = smul.u32 4, %s19
        %s420 = smul.u32 2, %s20
        %p421 = scmp.eq.s32.totalorder %s21, 0
        // Predicated region
        $region79: #{patch_embed_forward.1} parent=69 // pred_check
          %p422 = pneg %p421
        $region80: #{patch_embed_forward.1} parent=69 // pred_check_branch
          %424 = sbr.rel (%p422) target = $region82
        $region81: #{patch_embed_forward.1} parent=69 // pred_region
          %425 = vst [vmem:[#allocation2] sm:$0xff] 0.0
          %426 = vst [vmem:[#allocation2 + $0x8] sm:$0xff] 0.0
          %427 = vst [vmem:[#allocation2 + $0x10] sm:$0xff] 0.0
          %428 = vst [vmem:[#allocation2 + $0x18] sm:$0xff] 0.0
          %429 = vst [vmem:[#allocation2 + $0x20] sm:$0xff] 0.0
          %430 = vst [vmem:[#allocation2 + $0x28] sm:$0xff] 0.0
          %431 = vst [vmem:[#allocation2 + $0x30] sm:$0xff] 0.0
          %432 = vst [vmem:[#allocation2 + $0x38] sm:$0xff] 0.0
        $region82: #{patch_embed_forward.1} parent=69 // pred_fallthru
          _
        %v433 = vld [vmem:[#allocation2] sm:$0xff]
        %v434 = vld [vmem:[#allocation2 + $0x8] sm:$0xff]
        %v435 = vld [vmem:[#allocation2 + $0x10] sm:$0xff]
        %v436 = vld [vmem:[#allocation2 + $0x18] sm:$0xff]
        %v437 = vld [vmem:[#allocation2 + $0x20] sm:$0xff]
        %v438 = vld [vmem:[#allocation2 + $0x28] sm:$0xff]
        %v439 = vld [vmem:[#allocation2 + $0x30] sm:$0xff]
        %v440 = vld [vmem:[#allocation2 + $0x38] sm:$0xff]
        %v441 = vld [vmem:[%s375] sm:$0xff]
        %v442 = vld [vmem:[%s375 + $0x8] sm:$0xff]
        %v443 = vld [vmem:[%s375 + $0x10] sm:$0xff]
        %v444 = vld [vmem:[%s375 + $0x18] sm:$0xff]
        %v445 = vld [vmem:[%s375 + $0x20] sm:$0xff]
        %v446 = vld [vmem:[%s375 + $0x28] sm:$0xff]
        %v447 = vld [vmem:[%s375 + $0x30] sm:$0xff]
        %v448 = vld [vmem:[%s375 + $0x38] sm:$0xff]
        %v449 = vld [vmem:[%s382] sm:$0xff]
        %v450 = vld [vmem:[%s382 + $0x8] sm:$0xff]
        %v451 = vld [vmem:[%s382 + $0x10] sm:$0xff]
        %v452 = vld [vmem:[%s382 + $0x18] sm:$0xff]
        %v453 = vld [vmem:[%s382 + $0x20] sm:$0xff]
        %v454 = vld [vmem:[%s382 + $0x28] sm:$0xff]
        %v455 = vld [vmem:[%s382 + $0x30] sm:$0xff]
        %v456 = vld [vmem:[%s382 + $0x38] sm:$0xff]
        %v457 = vld [vmem:[%s382 + $0x40] sm:$0xff]
        %v458 = vld [vmem:[%s382 + $0x48] sm:$0xff]
        %v459 = vld [vmem:[%s382 + $0x50] sm:$0xff]
        %v460 = vld [vmem:[%s382 + $0x58] sm:$0xff]
        %v461 = vld [vmem:[%s382 + $0x60] sm:$0xff]
        %v462 = vld [vmem:[%s382 + $0x68] sm:$0xff]
        %v463 = vld [vmem:[%s382 + $0x70] sm:$0xff]
        %v464 = vld [vmem:[%s382 + $0x78] sm:$0xff]
        %v465 = vld [vmem:[%s382 + $0x80] sm:$0xff]
        %v466 = vld [vmem:[%s382 + $0x88] sm:$0xff]
        %v467 = vld [vmem:[%s382 + $0x90] sm:$0xff]
        %v468 = vld [vmem:[%s382 + $0x98] sm:$0xff]
        %v469 = vld [vmem:[%s382 + $0xa0] sm:$0xff]
        %v470 = vld [vmem:[%s382 + $0xa8] sm:$0xff]
        %v471 = vld [vmem:[%s382 + $0xb0] sm:$0xff]
        %v472 = vld [vmem:[%s382 + $0xb8] sm:$0xff]
        %v473 = vld [vmem:[%s382 + $0xc0] sm:$0xff]
        %v474 = vld [vmem:[%s382 + $0xc8] sm:$0xff]
        %v475 = vld [vmem:[%s382 + $0xd0] sm:$0xff]
        %v476 = vld [vmem:[%s382 + $0xd8] sm:$0xff]
        %v477 = vld [vmem:[%s382 + $0xe0] sm:$0xff]
        %v478 = vld [vmem:[%s382 + $0xe8] sm:$0xff]
        %v479 = vld [vmem:[%s382 + $0xf0] sm:$0xff]
        %v480 = vld [vmem:[%s382 + $0xf8] sm:$0xff]
        %v481 = vld [vmem:[%s382 + $0x100] sm:$0xff]
        %v482 = vld [vmem:[%s382 + $0x108] sm:$0xff]
        %v483 = vld [vmem:[%s382 + $0x110] sm:$0xff]
        %v484 = vld [vmem:[%s382 + $0x118] sm:$0xff]
        %v485 = vld [vmem:[%s382 + $0x120] sm:$0xff]
        %v486 = vld [vmem:[%s382 + $0x128] sm:$0xff]
        %v487 = vld [vmem:[%s382 + $0x130] sm:$0xff]
        %v488 = vld [vmem:[%s382 + $0x138] sm:$0xff]
        %v489 = vld [vmem:[%s382 + $0x140] sm:$0xff]
        %v490 = vld [vmem:[%s382 + $0x148] sm:$0xff]
        %v491 = vld [vmem:[%s382 + $0x150] sm:$0xff]
        %v492 = vld [vmem:[%s382 + $0x158] sm:$0xff]
        %v493 = vld [vmem:[%s382 + $0x160] sm:$0xff]
        %v494 = vld [vmem:[%s382 + $0x168] sm:$0xff]
        %v495 = vld [vmem:[%s382 + $0x170] sm:$0xff]
        %v496 = vld [vmem:[%s382 + $0x178] sm:$0xff]
        %v497 = vld [vmem:[%s382 + $0x180] sm:$0xff]
        %v498 = vld [vmem:[%s382 + $0x188] sm:$0xff]
        %v499 = vld [vmem:[%s382 + $0x190] sm:$0xff]
        %v500 = vld [vmem:[%s382 + $0x198] sm:$0xff]
        %v501 = vld [vmem:[%s382 + $0x1a0] sm:$0xff]
        %v502 = vld [vmem:[%s382 + $0x1a8] sm:$0xff]
        %v503 = vld [vmem:[%s382 + $0x1b0] sm:$0xff]
        %v504 = vld [vmem:[%s382 + $0x1b8] sm:$0xff]
        %v505 = vld [vmem:[%s382 + $0x1c0] sm:$0xff]
        %v506 = vld [vmem:[%s382 + $0x1c8] sm:$0xff]
        %v507 = vld [vmem:[%s382 + $0x1d0] sm:$0xff]
        %v508 = vld [vmem:[%s382 + $0x1d8] sm:$0xff]
        %v509 = vld [vmem:[%s382 + $0x1e0] sm:$0xff]
        %v510 = vld [vmem:[%s382 + $0x1e8] sm:$0xff]
        %v511 = vld [vmem:[%s382 + $0x1f0] sm:$0xff]
        %v512 = vld [vmem:[%s382 + $0x1f8] sm:$0xff]
        %513 = vmatprep.subr.mxu0 %v450
        %514 = vmatpush1.msra.mxu0 %v449
        %515 = vmatprep.subr.mxu0 %v452
        %516 = vmatpush1.msra.mxu0 %v451
        %517 = vmatprep.subr.mxu0 %v454
        %518 = vmatpush1.msra.mxu0 %v453
        %519 = vmatprep.subr.mxu0 %v456
        %520 = vmatpush1.msra.mxu0 %v455
        %521 = vmatprep.subr.mxu0 %v458
        %522 = vmatpush1.msra.mxu0 %v457
        %523 = vmatprep.subr.mxu0 %v460
        %524 = vmatpush1.msra.mxu0 %v459
        %525 = vmatprep.subr.mxu0 %v462
        %526 = vmatpush1.msra.mxu0 %v461
        %527 = vmatprep.subr.mxu0 %v464
        %528 = vmatpush1.msra.mxu0 %v463
        %529 = vmatprep.subr.mxu0 %v466
        %530 = vmatpush1.msra.mxu0 %v465
        %531 = vmatprep.subr.mxu0 %v468
        %532 = vmatpush1.msra.mxu0 %v467
        %533 = vmatprep.subr.mxu0 %v470
        %534 = vmatpush1.msra.mxu0 %v469
        %535 = vmatprep.subr.mxu0 %v472
        %536 = vmatpush1.msra.mxu0 %v471
        %537 = vmatprep.subr.mxu0 %v474
        %538 = vmatpush1.msra.mxu0 %v473
        %539 = vmatprep.subr.mxu0 %v476
        %540 = vmatpush1.msra.mxu0 %v475
        %541 = vmatprep.subr.mxu0 %v478
        %542 = vmatpush1.msra.mxu0 %v477
        %543 = vmatprep.subr.mxu0 %v480
        %544 = vmatpush1.msra.mxu0 %v479
        %545 = vmatprep.subr.mxu0 %v482
        %546 = vmatpush1.msra.mxu0 %v481
        %547 = vmatprep.subr.mxu0 %v484
        %548 = vmatpush1.msra.mxu0 %v483
        %549 = vmatprep.subr.mxu0 %v486
        %550 = vmatpush1.msra.mxu0 %v485
        %551 = vmatprep.subr.mxu0 %v488
        %552 = vmatpush1.msra.mxu0 %v487
        %553 = vmatprep.subr.mxu0 %v490
        %554 = vmatpush1.msra.mxu0 %v489
        %555 = vmatprep.subr.mxu0 %v492
        %556 = vmatpush1.msra.mxu0 %v491
        %557 = vmatprep.subr.mxu0 %v494
        %558 = vmatpush1.msra.mxu0 %v493
        %559 = vmatprep.subr.mxu0 %v496
        %560 = vmatpush1.msra.mxu0 %v495
        %561 = vmatprep.subr.mxu0 %v498
        %562 = vmatpush1.msra.mxu0 %v497
        %563 = vmatprep.subr.mxu0 %v500
        %564 = vmatpush1.msra.mxu0 %v499
        %565 = vmatprep.subr.mxu0 %v502
        %566 = vmatpush1.msra.mxu0 %v501
        %567 = vmatprep.subr.mxu0 %v504
        %568 = vmatpush1.msra.mxu0 %v503
        %569 = vmatprep.subr.mxu0 %v506
        %570 = vmatpush1.msra.mxu0 %v505
        %571 = vmatprep.subr.mxu0 %v508
        %572 = vmatpush1.msra.mxu0 %v507
        %573 = vmatprep.subr.mxu0 %v510
        %574 = vmatpush1.msra.mxu0 %v509
        %575 = vmatprep.subr.mxu0 %v512
        %576 = vmatpush1.msra.mxu0 %v511
        %577 = vmatprep.mubr.f32.mxu0 %v442
        %578 = vmatmul.mubr.f32.gmra.mrb[0].mxu0 %v441
        %v579 = vpop.f32.mrb[0].mxu0
        %v580 = vadd.f32 0.0, %v579
        %v581 = vpop.f32.mrb[0].mxu0
        %v582 = vadd.f32 0.0, %v581
        %583 = vmatprep.mubr.f32.mxu0 %v444
        %584 = vmatmul.mubr.f32.gmra.mrb[0].mxu0 %v443
        %v585 = vpop.f32.mrb[0].mxu0
        %v586 = vadd.f32 0.0, %v585
        %v587 = vpop.f32.mrb[0].mxu0
        %v588 = vadd.f32 0.0, %v587
        %589 = vmatprep.mubr.f32.mxu0 %v446
        %590 = vmatmul.mubr.f32.gmra.mrb[0].mxu0 %v445
        %v591 = vpop.f32.mrb[0].mxu0
        %v592 = vadd.f32 0.0, %v591
        %v593 = vpop.f32.mrb[0].mxu0
        %v594 = vadd.f32 0.0, %v593
        %595 = vmatprep.mubr.f32.mxu0 %v448
        %596 = vmatmul.mubr.f32.gmra.mrb[0].mxu0 %v447
        %v597 = vpop.f32.mrb[0].mxu0
        %v598 = vadd.f32 0.0, %v597
        %v599 = vpop.f32.mrb[0].mxu0
        %v600 = vadd.f32 0.0, %v599
        %601 = vdwg.mxu0
        %v602 = vadd.f32 %v433, %v580
        %v603 = vadd.f32 %v434, %v582
        %v604 = vadd.f32 %v435, %v586
        %v605 = vadd.f32 %v436, %v588
        %v606 = vadd.f32 %v437, %v592
        %v607 = vadd.f32 %v438, %v594
        %v608 = vadd.f32 %v439, %v598
        %v609 = vadd.f32 %v440, %v600
        %610 = vst [vmem:[#allocation2] sm:$0xff] %v602
        %611 = vst [vmem:[#allocation2 + $0x8] sm:$0xff] %v603
        %612 = vst [vmem:[#allocation2 + $0x10] sm:$0xff] %v604
        %613 = vst [vmem:[#allocation2 + $0x18] sm:$0xff] %v605
        %614 = vst [vmem:[#allocation2 + $0x20] sm:$0xff] %v606
        %615 = vst [vmem:[#allocation2 + $0x28] sm:$0xff] %v607
        %616 = vst [vmem:[#allocation2 + $0x30] sm:$0xff] %v608
        %617 = vst [vmem:[#allocation2 + $0x38] sm:$0xff] %v609
        %p618 = scmp.eq.s32.totalorder %s21, 2
        // Predicated region
        $region83: #{patch_embed_forward.1} parent=69 // pred_check
          %p619 = pneg %p618
        $region84: #{patch_embed_forward.1} parent=69 // pred_check_branch
          %621 = sbr.rel (%p619) target = $region86
        $region85: #{patch_embed_forward.1} parent=69 // pred_region
          %v622 = vld [vmem:[#allocation2] sm:$0xff]
          %v623 = vld [vmem:[#allocation2 + $0x8] sm:$0xff]
          %v624 = vld [vmem:[#allocation2 + $0x10] sm:$0xff]
          %v625 = vld [vmem:[#allocation2 + $0x18] sm:$0xff]
          %v626 = vld [vmem:[#allocation2 + $0x20] sm:$0xff]
          %v627 = vld [vmem:[#allocation2 + $0x28] sm:$0xff]
          %v628 = vld [vmem:[#allocation2 + $0x30] sm:$0xff]
          %v629 = vld [vmem:[#allocation2 + $0x38] sm:$0xff]
          %v630 = vld [vmem:[%s417] sm:$0x3]
          %v632 = vlaneseq
          %v633 = vshrl.u32 %v632, 7
          %v634 = vsub.s32 0, %v633
          %v635 = vrot.slane %v630, %v634
          %v636 = vlaneseq
          %v637 = vshrl.u32 %v636, 7
          %v638 = vsub.s32 1, %v637
          %v639 = vrot.slane %v630, %v638
          %v642 = vadd.f32 %v622, %v635
          %v643 = vadd.f32 %v623, %v639
          %v644 = vadd.f32 %v624, %v635
          %v645 = vadd.f32 %v625, %v639
          %v646 = vadd.f32 %v626, %v635
          %v647 = vadd.f32 %v627, %v639
          %v648 = vadd.f32 %v628, %v635
          %v649 = vadd.f32 %v629, %v639
          %650 = vst [vmem:[%s409] sm:$0xff] %v642
          %651 = vst [vmem:[%s409 + $0x8] sm:$0xff] %v643
          %652 = vst [vmem:[%s409 + $0x10] sm:$0xff] %v644
          %653 = vst [vmem:[%s409 + $0x18] sm:$0xff] %v645
          %654 = vst [vmem:[%s409 + $0x20] sm:$0xff] %v646
          %655 = vst [vmem:[%s409 + $0x28] sm:$0xff] %v647
          %656 = vst [vmem:[%s409 + $0x30] sm:$0xff] %v648
          %657 = vst [vmem:[%s409 + $0x38] sm:$0xff] %v649
        $region86: #{patch_embed_forward.1} parent=69 // pred_fallthru
          _
        %s658 = sand.u32 %s125, 1
        %s659 = sand.u32 %s125, 1
        %s660 = smul.addr %s659, 64
        %s661 = scalar_lea.vmem [#allocation5], %s660
        // Predicated region
        $region87: #{patch_embed_forward.1} parent=69 // pred_check
          %p662 = pneg %p135
        $region88: #{patch_embed_forward.1} parent=69 // pred_check_branch
          %664 = sbr.rel (%p662) target = $region90
        $region89: #{patch_embed_forward.1} parent=69 // pred_region
          %s665 = smul.u32 4, %s19
          %s666 = smul.u32 2, %s20
          %s667 = smul.addr %s665, 6
          %s668 = sadd.s32 %s666, %s667
          %s669 = smul.addr %s668, 8
          %s670 = scalar_lea.vmem %s3, %s669
          // Predicated region
          $region91: #{patch_embed_forward.1} parent=89 // pred_check
            _
          $region92: #{patch_embed_forward.1} parent=89 // pred_check_branch
            %672 = sbr.rel (0) target = $region94
          $region93: #{patch_embed_forward.1} parent=89 // pred_region
            // Predicated region
            $region95: #{patch_embed_forward.1} parent=93 // pred_check
              _
            $region96: #{patch_embed_forward.1} parent=93 // pred_check_branch
              %674 = sbr.rel (0) target = $region98
            $region97: #{patch_embed_forward.1} parent=93 // pred_region
              loop: start=0, step=1, limit=1
              $region99: #{patch_embed_forward.1} parent=97 // loop_pre_header
                _
              $region100: #{patch_embed_forward.1} parent=97 // loop_header
                %s676 = sphi 0, %s680
                %p677 = scmp.ge.s32.totalorder %s676, 1
                %s681 = sphi %s661, %s661
                %s682 = sphi %s670, %s670
              $region101: #{patch_embed_forward.1} parent=97 // loop_header_branch
                %679 = sbr.rel (%p677) target = $region105
              $region102: #{patch_embed_forward.1} parent=97 // loop_body
                %v683 = vld [vmem:[%s681] sm:$0xff]
                %684 = vst [vmem:[%s682] sm:$0xff] %v683
                %v685 = vld [vmem:[%s681 + $0x8] sm:$0xff]
                %686 = vst [vmem:[%s682 + $0x8] sm:$0xff] %v685
                %v687 = vld [vmem:[%s681 + $0x10] sm:$0xff]
                %688 = vst [vmem:[%s682 + $0x30] sm:$0xff] %v687
                %v689 = vld [vmem:[%s681 + $0x18] sm:$0xff]
                %690 = vst [vmem:[%s682 + $0x38] sm:$0xff] %v689
                %v691 = vld [vmem:[%s681 + $0x20] sm:$0xff]
                %692 = vst [vmem:[%s682 + $0x60] sm:$0xff] %v691
                %v693 = vld [vmem:[%s681 + $0x28] sm:$0xff]
                %694 = vst [vmem:[%s682 + $0x68] sm:$0xff] %v693
                %v695 = vld [vmem:[%s681 + $0x30] sm:$0xff]
                %696 = vst [vmem:[%s682 + $0x90] sm:$0xff] %v695
                %v697 = vld [vmem:[%s681 + $0x38] sm:$0xff]
                %698 = vst [vmem:[%s682 + $0x98] sm:$0xff] %v697
              $region103: #{patch_embed_forward.1} parent=97 // loop_footer
                %s680 = sadd.s32 1, %s676
              $region104: #{patch_embed_forward.1} parent=97 // loop_footer_branch
                %675 = sbr.rel target = $region100
              $region105: #{patch_embed_forward.1} parent=97 // loop_exit
                _
            $region98: #{patch_embed_forward.1} parent=93 // pred_fallthru
              _
            // Predicated region
            $region106: #{patch_embed_forward.1} parent=93 // pred_check
              _
            $region107: #{patch_embed_forward.1} parent=93 // pred_check_branch
              %700 = sbr.rel target = $region109
            $region108: #{patch_embed_forward.1} parent=93 // pred_region
              _
            $region109: #{patch_embed_forward.1} parent=93 // pred_fallthru
              _
          $region94: #{patch_embed_forward.1} parent=89 // pred_fallthru
            _
          %701 = vnop
        $region90: #{patch_embed_forward.1} parent=69 // pred_fallthru
          _
      $region70: #{patch_embed_forward.1} parent=5 // pred_fallthru
        _
      %p702 = scmp.le.s32.totalorder 2, %s9
      // Predicated region
      $region110: #{patch_embed_forward.1} parent=5 // pred_check
        %p703 = pneg %p702
      $region111: #{patch_embed_forward.1} parent=5 // pred_check_branch
        %705 = sbr.rel (%p703) target = $region113
      $region112: #{patch_embed_forward.1} parent=5 // pred_region
        %s706 = ssub.s32 %s9, 2
        // Predicated region
        $region114: #{patch_embed_forward.1} parent=112 // pred_check
          %p707 = pneg %p141
        $region115: #{patch_embed_forward.1} parent=112 // pred_check_branch
          %709 = sbr.rel (%p707) target = $region117
        $region116: #{patch_embed_forward.1} parent=112 // pred_region
          %s710 = sand.u32 %s126, 1
          %s711 = sand.u32 %s126, 1
          %s712 = smul.addr %s711, 64
          %s713 = scalar_lea.vmem [#allocation5], %s712
        $region117: #{patch_embed_forward.1} parent=112 // pred_fallthru
          _
      $region113: #{patch_embed_forward.1} parent=5 // pred_fallthru
        _
    $region6: #{patch_embed_forward.1} parent=1 // loop_footer
      %s13 = sadd.s32 1, %s9
    $region7: #{patch_embed_forward.1} parent=1 // loop_footer_branch
      %8 = sbr.rel target = $region3
    $region8: #{patch_embed_forward.1} parent=1 // loop_exit
      _

</llo_original>
